<compile_context>
chip_gen: v7x
topology: tpu7x:2x2x1
jax: 0.10.0
libtpu: 0.0.40
codegen_flags: <defaults>
</compile_context>

<pallas_src>
import math
import functools

import jax
import jax.numpy as jnp
from jax import lax
from jax.experimental import pallas as pl
from jax.experimental.pallas import tpu as pltpu


# --------------------------------------------------------------------------------------
# kernel
# --------------------------------------------------------------------------------------
def _aam_kernel(x_ref, w_ref, lab_ref, loss_ref, corr_ref,
                xb_scr, m_scr, l_scr, tgt_scr, nt_scr, *,
                K_sc, s, cos_m, sin_m, th, mm, easy_margin,
                num_class, class_tile, mask_pad, compute_prec1):
    c_idx = pl.program_id(1)

    @pl.when(c_idx == 0)
    def _init():
        x = x_ref[...].astype(jnp.float32)                                # (Bt, D)
        # F.normalize(x) folded with the AAM scale: xb = s * x / max(||x||, 1e-12)  (rsqrt -> EUP)
        inv_xn = lax.rsqrt(jnp.maximum(jnp.sum(x * x, axis=-1, keepdims=True), 1e-24))
        xb_scr[...] = (x * (s * inv_xn)).astype(jnp.bfloat16)
        m_scr[...] = jnp.full(m_scr.shape, -jnp.inf, jnp.float32)
        l_scr[...] = jnp.zeros(l_scr.shape, jnp.float32)
        tgt_scr[...] = jnp.zeros(tgt_scr.shape, jnp.float32)
        nt_scr[...] = jnp.full(nt_scr.shape, -jnp.inf, jnp.float32)

    xb = xb_scr[...]                                                      # (Bt, D) bf16, already * s
    lab = lab_ref[...]                                                    # (Bt, 1) int32
    Bt = xb.shape[0]
    Ct = w_ref.shape[2]

    # logits = s * max_k cos(x, w_k); weights pre-normalized, class dim on MXU lanes (D,Ct RHS).
    dims = (((1,), (0,)), ((), ()))                                       # contract over D
    logits = None
    for k in range(K_sc):
        dk = lax.dot_general(xb, w_ref[k], dims, preferred_element_type=jnp.float32)
        logits = dk if logits is None else jnp.maximum(logits, dk)

    local_col = lax.broadcasted_iota(jnp.int32, (Bt, Ct), 1)
    one_hot = local_col == (lab - c_idx * Ct)                             # local-iota compare
    if mask_pad:                                                          # traced only if C % C_TILE != 0
        logits = jnp.where(local_col < (num_class - c_idx * class_tile), logits, -1e30)

    # --- online softmax carries over the class tiles (margin applied only in finalize) ---
    m_prev = m_scr[...]
    m_new = jnp.maximum(m_prev, jnp.max(logits, axis=-1, keepdims=True))
    p = jnp.exp(logits - m_new)
    l_scr[...] = l_scr[...] * jnp.exp(m_prev - m_new) + jnp.sum(p, axis=-1, keepdims=True)
    m_scr[...] = m_new
    tgt_scr[...] = tgt_scr[...] + jnp.sum(jnp.where(one_hot, logits, 0.0),
                                          axis=-1, keepdims=True)
    if compute_prec1:
        nt_scr[...] = jnp.maximum(
            nt_scr[...],
            jnp.max(jnp.where(one_hot, -jnp.inf, logits), axis=-1, keepdims=True))

    @pl.when(c_idx == pl.num_programs(1) - 1)
    def _finalize():
        s_cos_t = tgt_scr[...]                                            # s * cos(theta_target)
        cos_t = s_cos_t * (1.0 / s)
        sine_t = jnp.sqrt(jnp.maximum(1.0 - cos_t * cos_t, 0.0))
        phi_t = cos_t * cos_m - sine_t * sin_m
        if easy_margin:
            phi_t = jnp.where(cos_t > 0, phi_t, cos_t)
        else:
            phi_t = jnp.where(cos_t - th > 0, phi_t, cos_t - mm)
        s_phi_t = phi_t * s
        m = m_scr[...]
        # swap the raw target term for the margin term inside the log-sum-exp
        l_corr = l_scr[...] - jnp.exp(s_cos_t - m) + jnp.exp(s_phi_t - m)
        lse = m + jnp.log(jnp.maximum(l_corr, 1e-30))
        loss_ref[...] = lse - s_phi_t                                     # per-sample CE
        if compute_prec1:
            # margin only lowers the target logit, so the modified argmax equals the label
            # iff s*phi_t still beats the best non-target logit.
            corr_ref[...] = (s_phi_t >= nt_scr[...]).astype(jnp.float32)
        else:
            corr_ref[...] = jnp.zeros(corr_ref.shape, jnp.float32)


# --------------------------------------------------------------------------------------
# tiling / wrapper
# --------------------------------------------------------------------------------------
def _round_up(x, q):
    return ((x + q - 1) // q) * q


def _vmem_capacity_bytes():
    try:
        return int(pltpu.get_tpu_info().vmem_capacity_bytes)
    except Exception:
        return 64 << 20                       # conservative (v7x per-TC)


def _choose_tiles(B, C, D, K_sc):
    vmem_cap = _vmem_capacity_bytes()
    if vmem_cap <= (64 << 20):                # v7x-class: 64 MiB/TC, 2 TCs
        b_target, c_target, two_cores = 256, 1024, True
    else:                                     # v5e / v6e: 128 MiB, 1 TC
        b_target, c_target, two_cores = 512, 2048, False
    B_TILE = min(b_target, _round_up(B, 8))
    if two_cores:
        # keep n_b >= 2 (when B allows) so the "parallel" batch axis spans both TensorCores
        B_TILE = min(B_TILE, max(8, _round_up((B + 1) // 2, 8)))
    C_TILE = min(c_target, _round_up(C, 128))

    def vmem_need(bt, ct):
        w = 2 * K_sc * D * ct * 2             # double-buffered bf16 weight block
        x = 2 * bt * D * 4 + bt * D * 2       # double-buffered f32 x block + bf16 xb scratch
        tmp = 6 * bt * ct * 4                 # live f32 (Bt, Ct) temporaries (logits/p/iota/masks)
        return w + x + tmp

    budget = int(vmem_cap * 0.45)             # headroom for compiler scratch / outputs
    while vmem_need(B_TILE, C_TILE) > budget and C_TILE > 128:
        C_TILE -= 128
    while vmem_need(B_TILE, C_TILE) > budget and B_TILE > 8:
        B_TILE -= 8
    return B_TILE, C_TILE, vmem_cap


def prepare_weight(weight, *, num_class, K_sc):
    """One-time: torch-layout (K_sc*num_class, D) weight (row c*K_sc + k) -> row-L2-normalized
    (computed in f32) weight stored MXU-native as (K_sc, D, num_class) bf16.
    Do this once per parameter update, not per forward call."""
    C, D = num_class, weight.shape[-1]
    w = jnp.asarray(weight, jnp.float32).reshape(C, K_sc, D)
    # F.normalize: w / max(||w||, 1e-12), in f32 for parity with the torch reference
    w = w * lax.rsqrt(jnp.maximum(jnp.sum(w * w, axis=-1, keepdims=True), 1e-24))
    return jnp.transpose(w, (1, 2, 0)).astype(jnp.bfloat16)              # (K_sc, D, C)


def aam_subcenter_intertopk_loss(x, w_kdc, label, *, margin=0.3, scale=15.0,
                                 easy_margin=False, mp=0.06, k_top=5, do_lm=False,
                                 compute_prec1=True):
    """Forward of LossFunction. `w_kdc` is prepare_weight()'s (K_sc, D, C) bf16 weight.
    Returns (loss, prec1, prec1, 0)."""
    B, D = x.shape
    K_sc, Dw, C = w_kdc.shape
    assert Dw == D and label.shape[0] == B

    if do_lm:
        mp, k_top = 0.0, 0

    cos_m, sin_m = math.cos(margin), math.sin(margin)
    th = math.cos(math.pi - margin)
    mm = math.sin(math.pi - margin) * margin
    # __init__ hard-codes the inter-topK angle to 0.0 (mp only takes effect after .update()):
    cos_mp, sin_mp = math.cos(0.0), math.sin(0.0)
    # With (cos_mp, sin_mp) == (1, 0), phi_mp == cosine and the inter-topK term cancels exactly,
    # so it is removed at trace time.
    if k_top > 0 and not (cos_mp == 1.0 and sin_mp == 0.0):
        # TODO(synk): active inter-topK (phi_mp != cosine after .update()) needs a running
        # top-k carry across the class tiles; not implemented in the tiled kernel.
        raise NotImplementedError("active inter-topK (phi_mp != cosine) not supported")

    B_TILE, C_TILE, vmem_cap = _choose_tiles(B, C, D, K_sc)
    B_pad = _round_up(B, B_TILE)
    C_pad = _round_up(C, C_TILE)
    n_b, n_c = B_pad // B_TILE, C_pad // C_TILE
    mask_pad = C_pad != C

    xf = x.astype(jnp.float32)
    lab2 = label.reshape(B, 1).astype(jnp.int32)
    if B_pad != B:                                    # padded rows are discarded below
        xf = jnp.pad(xf, ((0, B_pad - B), (0, 0)))
        lab2 = jnp.pad(lab2, ((0, B_pad - B), (0, 0)))
    w = w_kdc.astype(jnp.bfloat16)
    if mask_pad:
        # In production, fold this zero-pad of the class dim into prepare_weight (one-time).
        w = jnp.pad(w, ((0, 0), (0, 0), (0, C_pad - C)))

    kernel = functools.partial(
        _aam_kernel, K_sc=K_sc, s=float(scale), cos_m=cos_m, sin_m=sin_m, th=th, mm=mm,
        easy_margin=easy_margin, num_class=C, class_tile=C_TILE,
        mask_pad=mask_pad, compute_prec1=compute_prec1)

    loss_per, corr_per = pl.pallas_call(
        kernel,
        out_shape=(jax.ShapeDtypeStruct((B_pad, 1), jnp.float32),
                   jax.ShapeDtypeStruct((B_pad, 1), jnp.float32)),
        grid_spec=pltpu.PrefetchScalarGridSpec(
            num_scalar_prefetch=0,
            grid=(n_b, n_c),
            in_specs=[pl.BlockSpec((B_TILE, D), lambda b, c: (b, 0)),
                      pl.BlockSpec((K_sc, D, C_TILE), lambda b, c: (0, 0, c)),
                      pl.BlockSpec((B_TILE, 1), lambda b, c: (b, 0))],
            out_specs=(pl.BlockSpec((B_TILE, 1), lambda b, c: (b, 0)),
                       pl.BlockSpec((B_TILE, 1), lambda b, c: (b, 0))),
            scratch_shapes=[pltpu.VMEM((B_TILE, D), jnp.bfloat16),   # s * normalized x (hoisted)
                            pltpu.VMEM((B_TILE, 1), jnp.float32),    # running max (all classes)
                            pltpu.VMEM((B_TILE, 1), jnp.float32),    # running sum-exp
                            pltpu.VMEM((B_TILE, 1), jnp.float32),    # s * cos(target)
                            pltpu.VMEM((B_TILE, 1), jnp.float32)]),  # running non-target max
        compiler_params=pltpu.CompilerParams(
            dimension_semantics=("parallel", "arbitrary"),
            vmem_limit_bytes=max(min(int(vmem_cap * 3 // 4), 96 << 20), 32 << 20)),
    )(xf, w, lab2)

    loss = jnp.mean(loss_per[:B, 0])                  # nn.CrossEntropyLoss (mean reduction)
    prec1 = jnp.mean(corr_per[:B, 0]) * 100.0         # accuracy(..., topk=(1,))[0]
    return loss, prec1, prec1, 0


# --------------------------------------------------------------------------------------
# pure-JAX f32 reference (mirrors the torch forward at __init__ state) — for sanity check
# --------------------------------------------------------------------------------------
def _reference_forward(x, weight, label, *, num_class, K_sc, margin, scale, easy_margin):
    cos_m, sin_m = math.cos(margin), math.sin(margin)
    th = math.cos(math.pi - margin)
    mm = math.sin(math.pi - margin) * margin
    xn = x / jnp.maximum(jnp.linalg.norm(x, axis=1, keepdims=True), 1e-12)
    wn = weight / jnp.maximum(jnp.linalg.norm(weight, axis=1, keepdims=True), 1e-12)
    cos = (xn @ wn.T).reshape(-1, num_class, K_sc).max(axis=2)
    sine = jnp.sqrt(jnp.maximum(1.0 - cos ** 2, 0.0))
    phi = cos * cos_m - sine * sin_m
    phi = jnp.where(cos > 0, phi, cos) if easy_margin else jnp.where(cos - th > 0, phi, cos - mm)
    one_hot = jax.nn.one_hot(label, num_class, dtype=jnp.float32)
    out = (one_hot * phi + (1.0 - one_hot) * cos) * scale
    m = jnp.max(out, axis=1, keepdims=True)
    lse = (m + jnp.log(jnp.sum(jnp.exp(out - m), axis=1, keepdims=True)))[:, 0]
    loss = jnp.mean(lse - out[jnp.arange(x.shape[0]), label])
    prec1 = jnp.mean((jnp.argmax(out, axis=1) == label).astype(jnp.float32)) * 100.0
    return loss, prec1


if __name__ == "__main__":
    key = jax.random.PRNGKey(0)
    B, D, C, K = 8, 32, 16, 3                 # batch, num_out, num_class, K_sc
    k1, k2, k3 = jax.random.split(key, 3)

    x = jax.random.normal(k1, (B, D), dtype=jnp.float32)
    # xavier_normal_(gain=1) on (K*C, D): std = sqrt(2 / (fan_in + fan_out)), torch row layout
    std = math.sqrt(2.0 / (D + K * C))
    weight = std * jax.random.normal(k2, (K * C, D), dtype=jnp.float32)
    label = jax.random.randint(k3, (B,), 0, C, dtype=jnp.int32)

    w_kdc = prepare_weight(weight, num_class=C, K_sc=K)   # one-time f32 normalize + layout + bf16

    loss, prec1, prec2, zero = aam_subcenter_intertopk_loss(
        x, w_kdc, label, margin=0.3, scale=15.0, easy_margin=False,
        mp=0.06, k_top=5, do_lm=False)
    jax.block_until_ready((loss, prec1))

    # loose sanity check vs the f32 reference (bf16 MXU operands give ~1e-3 cosine error)
    ref_loss, ref_prec1 = _reference_forward(
        x, weight, label, num_class=C, K_sc=K, margin=0.3, scale=15.0, easy_margin=False)
    assert abs(float(loss) - float(ref_loss)) < 0.2, (float(loss), float(ref_loss))

    print("KERNEL_OK")
</pallas_src>

<mosaic_0001>
module attributes {stable_mosaic.version = 11 : i64} {
  func.func @_aam_kernel(%arg0: i32, %arg1: i32, %arg2: memref<8x32xf32, #tpu.memory_space<vmem>>, %arg3: memref<3x32x128xbf16, #tpu.memory_space<vmem>>, %arg4: memref<8x1xi32, #tpu.memory_space<vmem>>, %arg5: memref<8x1xf32, #tpu.memory_space<vmem>>, %arg6: memref<8x1xf32, #tpu.memory_space<vmem>>, %arg7: memref<8x32xbf16, #tpu.memory_space<vmem>>, %arg8: memref<8x1xf32, #tpu.memory_space<vmem>>, %arg9: memref<8x1xf32, #tpu.memory_space<vmem>>, %arg10: memref<8x1xf32, #tpu.memory_space<vmem>>, %arg11: memref<8x1xf32, #tpu.memory_space<vmem>>) attributes {dimension_semantics = [#tpu.dimension_semantics<parallel>, #tpu.dimension_semantics<arbitrary>], iteration_bounds = array<i64: 1, 1>, scalar_prefetch = 0 : i64, scratch_operands = 5 : i64, tpu.core_type = #tpu.core_type<tc>, window_params = [{transform_indices = @transform_0, window_bounds = array<i64: 8, 32>}, {transform_indices = @transform_1, window_bounds = array<i64: 3, 32, 128>}, {transform_indices = @transform_2, window_bounds = array<i64: 8, 1>}, {transform_indices = @transform_3, window_bounds = array<i64: 8, 1>}, {transform_indices = @transform_4, window_bounds = array<i64: 8, 1>}]} {
    %c0_i32 = arith.constant 0 : i32
    %0 = arith.cmpi eq, %arg1, %c0_i32 : i32
    %1 = arith.extui %0 : i1 to i32
    %c0_i32_0 = arith.constant 0 : i32
    %2 = arith.cmpi ne, %1, %c0_i32_0 : i32
    scf.if %2 {
      %c0_39 = arith.constant 0 : index
      %c0_40 = arith.constant 0 : index
      %61 = vector.load %arg2[%c0_39, %c0_40] : memref<8x32xf32, #tpu.memory_space<vmem>>, vector<8x32xf32>
      %62 = arith.mulf %61, %61 : vector<8x32xf32>
      %cst_41 = arith.constant dense<0.000000e+00> : vector<8xf32>
      %63 = vector.multi_reduction <add>, %62, %cst_41 [1] : vector<8x32xf32> to vector<8xf32>
      %64 = vector.shape_cast %63 : vector<8xf32> to vector<8x1xf32>
      %cst_42 = arith.constant 1.000000e-24 : f32
      %65 = vector.broadcast %cst_42 : f32 to vector<8x1xf32>
      %66 = arith.maximumf %64, %65 : vector<8x1xf32>
      %67 = math.rsqrt %66 : vector<8x1xf32>
      %cst_43 = arith.constant 1.500000e+01 : f32
      %68 = vector.broadcast %cst_43 : f32 to vector<8x1xf32>
      %69 = arith.mulf %68, %67 : vector<8x1xf32>
      %70 = vector.broadcast %69 : vector<8x1xf32> to vector<8x32xf32>
      %71 = arith.mulf %61, %70 : vector<8x32xf32>
      %72 = arith.truncf %71 : vector<8x32xf32> to vector<8x32xbf16>
      %c0_44 = arith.constant 0 : index
      %c0_45 = arith.constant 0 : index
      %73 = vector.load %arg7[%c0_44, %c0_45] : memref<8x32xbf16, #tpu.memory_space<vmem>>, vector<8x32xbf16>
      tpu.vector_store %arg7[%c0_44, %c0_45], %72 {strides = array<i32>} : memref<8x32xbf16, #tpu.memory_space<vmem>>, vector<8x32xbf16>,
      %cst_46 = arith.constant 0xFF800000 : f32
      %74 = vector.broadcast %cst_46 : f32 to vector<8x1xf32>
      %c0_47 = arith.constant 0 : index
      %c0_48 = arith.constant 0 : index
      %75 = vector.load %arg8[%c0_47, %c0_48] : memref<8x1xf32, #tpu.memory_space<vmem>>, vector<8x1xf32>
      tpu.vector_store %arg8[%c0_47, %c0_48], %74 {strides = array<i32>} : memref<8x1xf32, #tpu.memory_space<vmem>>, vector<8x1xf32>,
      %cst_49 = arith.constant 0.000000e+00 : f32
      %76 = vector.broadcast %cst_49 : f32 to vector<8x1xf32>
      %c0_50 = arith.constant 0 : index
      %c0_51 = arith.constant 0 : index
      %77 = vector.load %arg9[%c0_50, %c0_51] : memref<8x1xf32, #tpu.memory_space<vmem>>, vector<8x1xf32>
      tpu.vector_store %arg9[%c0_50, %c0_51], %76 {strides = array<i32>} : memref<8x1xf32, #tpu.memory_space<vmem>>, vector<8x1xf32>,
      %cst_52 = arith.constant 0.000000e+00 : f32
      %78 = vector.broadcast %cst_52 : f32 to vector<8x1xf32>
      %c0_53 = arith.constant 0 : index
      %c0_54 = arith.constant 0 : index
      %79 = vector.load %arg10[%c0_53, %c0_54] : memref<8x1xf32, #tpu.memory_space<vmem>>, vector<8x1xf32>
      tpu.vector_store %arg10[%c0_53, %c0_54], %78 {strides = array<i32>} : memref<8x1xf32, #tpu.memory_space<vmem>>, vector<8x1xf32>,
      %cst_55 = arith.constant 0xFF800000 : f32
      %80 = vector.broadcast %cst_55 : f32 to vector<8x1xf32>
      %c0_56 = arith.constant 0 : index
      %c0_57 = arith.constant 0 : index
      %81 = vector.load %arg11[%c0_56, %c0_57] : memref<8x1xf32, #tpu.memory_space<vmem>>, vector<8x1xf32>
      tpu.vector_store %arg11[%c0_56, %c0_57], %80 {strides = array<i32>} : memref<8x1xf32, #tpu.memory_space<vmem>>, vector<8x1xf32>,
    } else {
    }
    %c0 = arith.constant 0 : index
    %c0_1 = arith.constant 0 : index
    %3 = vector.load %arg7[%c0, %c0_1] : memref<8x32xbf16, #tpu.memory_space<vmem>>, vector<8x32xbf16>
    %c0_2 = arith.constant 0 : index
    %c0_3 = arith.constant 0 : index
    %4 = vector.load %arg4[%c0_2, %c0_3] : memref<8x1xi32, #tpu.memory_space<vmem>>, vector<8x1xi32>
    %c0_4 = arith.constant 0 : index
    %c0_5 = arith.constant 0 : index
    %c0_6 = arith.constant 0 : index
    %5 = vector.load %arg3[%c0_4, %c0_5, %c0_6] : memref<3x32x128xbf16, #tpu.memory_space<vmem>>, vector<1x32x128xbf16>
    %6 = vector.shape_cast %5 : vector<1x32x128xbf16> to vector<32x128xbf16>
    %cst = arith.constant dense<0.000000e+00> : vector<8x128xf32>
    %7 = tpu.matmul %3, %6, %cst {dimension_numbers = #tpu.dot_dimension_numbers<[1], [0], [0], [1], [0, 0, 1, 1], [], []>} : vector<8x32xbf16>, vector<32x128xbf16>, vector<8x128xf32> -> vector<8x128xf32>
    %c1 = arith.constant 1 : index
    %c0_7 = arith.constant 0 : index
    %c0_8 = arith.constant 0 : index
    %8 = vector.load %arg3[%c1, %c0_7, %c0_8] : memref<3x32x128xbf16, #tpu.memory_space<vmem>>, vector<1x32x128xbf16>
    %9 = vector.shape_cast %8 : vector<1x32x128xbf16> to vector<32x128xbf16>
    %cst_9 = arith.constant dense<0.000000e+00> : vector<8x128xf32>
    %10 = tpu.matmul %3, %9, %cst_9 {dimension_numbers = #tpu.dot_dimension_numbers<[1], [0], [0], [1], [0, 0, 1, 1], [], []>} : vector<8x32xbf16>, vector<32x128xbf16>, vector<8x128xf32> -> vector<8x128xf32>
    %11 = arith.maximumf %7, %10 : vector<8x128xf32>
    %c2 = arith.constant 2 : index
    %c0_10 = arith.constant 0 : index
    %c0_11 = arith.constant 0 : index
    %12 = vector.load %arg3[%c2, %c0_10, %c0_11] : memref<3x32x128xbf16, #tpu.memory_space<vmem>>, vector<1x32x128xbf16>
    %13 = vector.shape_cast %12 : vector<1x32x128xbf16> to vector<32x128xbf16>
    %cst_12 = arith.constant dense<0.000000e+00> : vector<8x128xf32>
    %14 = tpu.matmul %3, %13, %cst_12 {dimension_numbers = #tpu.dot_dimension_numbers<[1], [0], [0], [1], [0, 0, 1, 1], [], []>} : vector<8x32xbf16>, vector<32x128xbf16>, vector<8x128xf32> -> vector<8x128xf32>
    %15 = arith.maximumf %11, %14 : vector<8x128xf32>
    %16 = tpu.iota {dimensions = array<i32: 1>} : vector<8x128xi32>
    %c128_i32 = arith.constant 128 : i32
    %17 = arith.muli %arg1, %c128_i32 : i32
    %18 = vector.broadcast %17 : i32 to vector<8x1xi32>
    %19 = arith.subi %4, %18 : vector<8x1xi32>
    %20 = vector.broadcast %19 : vector<8x1xi32> to vector<8x128xi32>
    %21 = arith.cmpi eq, %16, %20 : vector<8x128xi32>
    %c128_i32_13 = arith.constant 128 : i32
    %22 = arith.muli %arg1, %c128_i32_13 : i32
    %c16_i32 = arith.constant 16 : i32
    %23 = arith.subi %c16_i32, %22 : i32
    %24 = vector.broadcast %23 : i32 to vector<8x128xi32>
    %25 = arith.cmpi slt, %16, %24 : vector<8x128xi32>
    %cst_14 = arith.constant -1.000000e+30 : f32
    %26 = vector.broadcast %cst_14 : f32 to vector<8x128xf32>
    %27 = arith.select %25, %15, %26 : vector<8x128xi1>, vector<8x128xf32>
    %c0_15 = arith.constant 0 : index
    %c0_16 = arith.constant 0 : index
    %28 = vector.load %arg8[%c0_15, %c0_16] : memref<8x1xf32, #tpu.memory_space<vmem>>, vector<8x1xf32>
    %cst_17 = arith.constant dense<0xFF800000> : vector<8xf32>
    %29 = vector.multi_reduction <maximumf>, %27, %cst_17 [1] : vector<8x128xf32> to vector<8xf32>
    %30 = vector.shape_cast %29 : vector<8xf32> to vector<8x1xf32>
    %31 = arith.maximumf %28, %30 : vector<8x1xf32>
    %32 = vector.broadcast %31 : vector<8x1xf32> to vector<8x128xf32>
    %33 = arith.subf %27, %32 : vector<8x128xf32>
    %34 = math.exp %33 : vector<8x128xf32>
    %c0_18 = arith.constant 0 : index
    %c0_19 = arith.constant 0 : index
    %35 = vector.load %arg9[%c0_18, %c0_19] : memref<8x1xf32, #tpu.memory_space<vmem>>, vector<8x1xf32>
    %36 = arith.subf %28, %31 : vector<8x1xf32>
    %37 = math.exp %36 : vector<8x1xf32>
    %38 = arith.mulf %35, %37 : vector<8x1xf32>
    %cst_20 = arith.constant dense<0.000000e+00> : vector<8xf32>
    %39 = vector.multi_reduction <add>, %34, %cst_20 [1] : vector<8x128xf32> to vector<8xf32>
    %40 = vector.shape_cast %39 : vector<8xf32> to vector<8x1xf32>
    %41 = arith.addf %38, %40 : vector<8x1xf32>
    %c0_21 = arith.constant 0 : index
    %c0_22 = arith.constant 0 : index
    %42 = vector.load %arg9[%c0_21, %c0_22] : memref<8x1xf32, #tpu.memory_space<vmem>>, vector<8x1xf32>
    tpu.vector_store %arg9[%c0_21, %c0_22], %41 {strides = array<i32>} : memref<8x1xf32, #tpu.memory_space<vmem>>, vector<8x1xf32>,
    %c0_23 = arith.constant 0 : index
    %c0_24 = arith.constant 0 : index
    %43 = vector.load %arg8[%c0_23, %c0_24] : memref<8x1xf32, #tpu.memory_space<vmem>>, vector<8x1xf32>
    tpu.vector_store %arg8[%c0_23, %c0_24], %31 {strides = array<i32>} : memref<8x1xf32, #tpu.memory_space<vmem>>, vector<8x1xf32>,
    %c0_25 = arith.constant 0 : index
    %c0_26 = arith.constant 0 : index
    %44 = vector.load %arg10[%c0_25, %c0_26] : memref<8x1xf32, #tpu.memory_space<vmem>>, vector<8x1xf32>
    %cst_27 = arith.constant 0.000000e+00 : f32
    %45 = vector.broadcast %cst_27 : f32 to vector<8x128xf32>
    %46 = arith.select %21, %27, %45 : vector<8x128xi1>, vector<8x128xf32>
    %cst_28 = arith.constant dense<0.000000e+00> : vector<8xf32>
    %47 = vector.multi_reduction <add>, %46, %cst_28 [1] : vector<8x128xf32> to vector<8xf32>
    %48 = vector.shape_cast %47 : vector<8xf32> to vector<8x1xf32>
    %49 = arith.addf %44, %48 : vector<8x1xf32>
    %c0_29 = arith.constant 0 : index
    %c0_30 = arith.constant 0 : index
    %50 = vector.load %arg10[%c0_29, %c0_30] : memref<8x1xf32, #tpu.memory_space<vmem>>, vector<8x1xf32>
    tpu.vector_store %arg10[%c0_29, %c0_30], %49 {strides = array<i32>} : memref<8x1xf32, #tpu.memory_space<vmem>>, vector<8x1xf32>,
    %c0_31 = arith.constant 0 : index
    %c0_32 = arith.constant 0 : index
    %51 = vector.load %arg11[%c0_31, %c0_32] : memref<8x1xf32, #tpu.memory_space<vmem>>, vector<8x1xf32>
    %cst_33 = arith.constant 0xFF800000 : f32
    %52 = vector.broadcast %cst_33 : f32 to vector<8x128xf32>
    %53 = arith.select %21, %52, %27 : vector<8x128xi1>, vector<8x128xf32>
    %cst_34 = arith.constant dense<0xFF800000> : vector<8xf32>
    %54 = vector.multi_reduction <maximumf>, %53, %cst_34 [1] : vector<8x128xf32> to vector<8xf32>
    %55 = vector.shape_cast %54 : vector<8xf32> to vector<8x1xf32>
    %56 = arith.maximumf %51, %55 : vector<8x1xf32>
    %c0_35 = arith.constant 0 : index
    %c0_36 = arith.constant 0 : index
    %57 = vector.load %arg11[%c0_35, %c0_36] : memref<8x1xf32, #tpu.memory_space<vmem>>, vector<8x1xf32>
    tpu.vector_store %arg11[%c0_35, %c0_36], %56 {strides = array<i32>} : memref<8x1xf32, #tpu.memory_space<vmem>>, vector<8x1xf32>,
    %c0_i32_37 = arith.constant 0 : i32
    %58 = arith.cmpi eq, %arg1, %c0_i32_37 : i32
    %59 = arith.extui %58 : i1 to i32
    %c0_i32_38 = arith.constant 0 : i32
    %60 = arith.cmpi ne, %59, %c0_i32_38 : i32
    scf.if %60 {
      %c0_39 = arith.constant 0 : index
      %c0_40 = arith.constant 0 : index
      %61 = vector.load %arg10[%c0_39, %c0_40] : memref<8x1xf32, #tpu.memory_space<vmem>>, vector<8x1xf32>
      %cst_41 = arith.constant 0.0666666701 : f32
      %62 = vector.broadcast %cst_41 : f32 to vector<8x1xf32>
      %63 = arith.mulf %61, %62 : vector<8x1xf32>
      %64 = arith.mulf %63, %63 : vector<8x1xf32>
      %cst_42 = arith.constant 1.000000e+00 : f32
      %65 = vector.broadcast %cst_42 : f32 to vector<8x1xf32>
      %66 = arith.subf %65, %64 : vector<8x1xf32>
      %cst_43 = arith.constant 0.000000e+00 : f32
      %67 = vector.broadcast %cst_43 : f32 to vector<8x1xf32>
      %68 = arith.maximumf %66, %67 : vector<8x1xf32>
      %69 = math.sqrt %68 : vector<8x1xf32>
      %cst_44 = arith.constant 0.955336511 : f32
      %70 = vector.broadcast %cst_44 : f32 to vector<8x1xf32>
      %71 = arith.mulf %63, %70 : vector<8x1xf32>
      %cst_45 = arith.constant 0.295520216 : f32
      %72 = vector.broadcast %cst_45 : f32 to vector<8x1xf32>
      %73 = arith.mulf %69, %72 : vector<8x1xf32>
      %74 = arith.subf %71, %73 : vector<8x1xf32>
      %cst_46 = arith.constant -0.955336511 : f32
      %75 = vector.broadcast %cst_46 : f32 to vector<8x1xf32>
      %76 = arith.subf %63, %75 : vector<8x1xf32>
      %cst_47 = arith.constant 0.000000e+00 : f32
      %77 = vector.broadcast %cst_47 : f32 to vector<8x1xf32>
      %78 = arith.cmpf ogt, %76, %77 : vector<8x1xf32>
      %cst_48 = arith.constant 0.0886560603 : f32
      %79 = vector.broadcast %cst_48 : f32 to vector<8x1xf32>
      %80 = arith.subf %63, %79 : vector<8x1xf32>
      %81 = arith.select %78, %74, %80 : vector<8x1xi1>, vector<8x1xf32>
      %cst_49 = arith.constant 1.500000e+01 : f32
      %82 = vector.broadcast %cst_49 : f32 to vector<8x1xf32>
      %83 = arith.mulf %81, %82 : vector<8x1xf32>
      %c0_50 = arith.constant 0 : index
      %c0_51 = arith.constant 0 : index
      %84 = vector.load %arg8[%c0_50, %c0_51] : memref<8x1xf32, #tpu.memory_space<vmem>>, vector<8x1xf32>
      %c0_52 = arith.constant 0 : index
      %c0_53 = arith.constant 0 : index
      %85 = vector.load %arg9[%c0_52, %c0_53] : memref<8x1xf32, #tpu.memory_space<vmem>>, vector<8x1xf32>
      %86 = arith.subf %61, %84 : vector<8x1xf32>
      %87 = math.exp %86 : vector<8x1xf32>
      %88 = arith.subf %85, %87 : vector<8x1xf32>
      %89 = arith.subf %83, %84 : vector<8x1xf32>
      %90 = math.exp %89 : vector<8x1xf32>
      %91 = arith.addf %88, %90 : vector<8x1xf32>
      %cst_54 = arith.constant 1.000000e-30 : f32
      %92 = vector.broadcast %cst_54 : f32 to vector<8x1xf32>
      %93 = arith.maximumf %91, %92 : vector<8x1xf32>
      %94 = math.log %93 : vector<8x1xf32>
      %95 = arith.addf %84, %94 : vector<8x1xf32>
      %96 = arith.subf %95, %83 : vector<8x1xf32>
      %c0_55 = arith.constant 0 : index
      %c0_56 = arith.constant 0 : index
      %97 = vector.load %arg5[%c0_55, %c0_56] : memref<8x1xf32, #tpu.memory_space<vmem>>, vector<8x1xf32>
      tpu.vector_store %arg5[%c0_55, %c0_56], %96 {strides = array<i32>} : memref<8x1xf32, #tpu.memory_space<vmem>>, vector<8x1xf32>,
      %c0_57 = arith.constant 0 : index
      %c0_58 = arith.constant 0 : index
      %98 = vector.load %arg11[%c0_57, %c0_58] : memref<8x1xf32, #tpu.memory_space<vmem>>, vector<8x1xf32>
      %99 = arith.cmpf oge, %83, %98 : vector<8x1xf32>
      %100 = arith.extui %99 : vector<8x1xi1> to vector<8x1xi32>
      %101 = arith.sitofp %100 : vector<8x1xi32> to vector<8x1xf32>
      %c0_59 = arith.constant 0 : index
      %c0_60 = arith.constant 0 : index
      %102 = vector.load %arg6[%c0_59, %c0_60] : memref<8x1xf32, #tpu.memory_space<vmem>>, vector<8x1xf32>
      tpu.vector_store %arg6[%c0_59, %c0_60], %101 {strides = array<i32>} : memref<8x1xf32, #tpu.memory_space<vmem>>, vector<8x1xf32>,
    } else {
    }
    return
  }
  func.func @transform_0(%arg0: i32, %arg1: i32) -> (i32, i32) {
    %c0_i32 = arith.constant 0 : i32
    %c0_i32_0 = arith.constant 0 : i32
    return %arg0, %c0_i32 : i32, i32
  }
  func.func @transform_1(%arg0: i32, %arg1: i32) -> (i32, i32, i32) {
    %c0_i32 = arith.constant 0 : i32
    %c0_i32_0 = arith.constant 0 : i32
    %c0_i32_1 = arith.constant 0 : i32
    return %c0_i32, %c0_i32_0, %arg1 : i32, i32, i32
  }
  func.func @transform_2(%arg0: i32, %arg1: i32) -> (i32, i32) {
    %c0_i32 = arith.constant 0 : i32
    %c0_i32_0 = arith.constant 0 : i32
    return %arg0, %c0_i32 : i32, i32
  }
  func.func @transform_3(%arg0: i32, %arg1: i32) -> (i32, i32) {
    %c0_i32 = arith.constant 0 : i32
    %c0_i32_0 = arith.constant 0 : i32
    return %arg0, %c0_i32 : i32, i32
  }
  func.func @transform_4(%arg0: i32, %arg1: i32) -> (i32, i32) {
    %c0_i32 = arith.constant 0 : i32
    %c0_i32_0 = arith.constant 0 : i32
    return %arg0, %c0_i32 : i32, i32
  }
}

</mosaic_0001>

<llo_original>
// kernel: tpu_custom_call.1
$region0: #{tpu_custom_call.1}
  #allocation0 [shape = 'u32[]', space=smem, size = 0x4, offset = 0x4, fixed_abs, tag = 'smem constant byte address 0x4 - core index']
  #allocation1 [shape = 'u32[144,128]{1,0:T(1,128)}', space=vmem, size = 0x12000, scoped, tag = 'internal scratch']
  #allocation2 [shape = 'bf16[8,32]{1,0:T(8,128)(2,1)}', space=vmem, size = 0x800, scoped, tag = 'scratch operand']
  #allocation3 [shape = 'f32[8,1]{1,0:T(8,128)}', space=vmem, size = 0x1000, scoped, tag = 'scratch operand']
  #allocation4 [shape = 'f32[8,1]{1,0:T(8,128)}', space=vmem, size = 0x1000, scoped, tag = 'scratch operand']
  #allocation5 [shape = 'f32[8,1]{1,0:T(8,128)}', space=vmem, size = 0x1000, scoped, tag = 'scratch operand']
  #allocation6 [shape = 'f32[8,1]{1,0:T(8,128)}', space=vmem, size = 0x1000, scoped, tag = 'scratch operand']
  %s0 = inlined_call_operand.vmem [shape: f32[8,32], index: 0, kind: input, shape index: {}]
  %s1 = inlined_call_operand.hbm [shape: bf16[3,32,128], index: 1, kind: input, shape index: {}]
  %s2 = inlined_call_operand.vmem [shape: s32[8,1], index: 2, kind: input, shape index: {}]
  %s3 = inlined_call_operand.vmem [shape: f32[8,1], index: 3, kind: output, shape index: {0}]
  %s4 = inlined_call_operand.vmem [shape: f32[8,1], index: 4, kind: output, shape index: {1}]
  %5 = xla_tuple %s3, %s4
  %s6 = sld [smem:[#allocation0]]
  $region42: #{tpu_custom_call.1} parent=0
    _
  %s8 = ssub.s32 1, %s6
  %s9 = scalar_select 0, %s8, %s6
  $region1: #{tpu_custom_call.1} parent=0
    #allocation7 [shape = 'u8[24576]{0}', space=vmem, size = 0x6000, scoped, tag = 'input window, operand 1, single buffered']
    #allocation8 [shape = 's32[1]{0}', space=sflag, size = 0x4, scoped, tag = 'scoped memory for tpu_custom_call.1']
    %10 = vsyncpa [#allocation8], 0
    // Predicated region
    $region2: #{tpu_custom_call.1} parent=1 // pred_check
      _
    $region3: #{tpu_custom_call.1} parent=1 // pred_check_branch
      %12 = sbr.rel (0) target = $region5
    $region4: #{tpu_custom_call.1} parent=1 // pred_region
      _
    $region5: #{tpu_custom_call.1} parent=1 // pred_fallthru
      _
    // Predicated region
    $region6: #{tpu_custom_call.1} parent=1 // pred_check
      _
    $region7: #{tpu_custom_call.1} parent=1 // pred_check_branch
      %14 = sbr.rel (0) target = $region9
    $region8: #{tpu_custom_call.1} parent=1 // pred_region
      %s16 = ssub.s32 768, 768
      %17 = vsyncadd [#allocation8], %s16
      %s18 = sshll.u32 [#allocation7], 4
      %s19 = int_to_ptr.vmem [resolvable:$true] %s18
      %24 = dma.hbm_to_vmem [thread:$0]  %s1, 768, %s19, [#allocation8], 64, 64, 4
    $region9: #{tpu_custom_call.1} parent=1 // pred_fallthru
      _
    // Predicated region
    $region10: #{tpu_custom_call.1} parent=1 // pred_check
      _
    $region11: #{tpu_custom_call.1} parent=1 // pred_check_branch
      %26 = sbr.rel (0) target = $region13
    $region12: #{tpu_custom_call.1} parent=1 // pred_region
      _
    $region13: #{tpu_custom_call.1} parent=1 // pred_fallthru
      _
    // Predicated region
    $region14: #{tpu_custom_call.1} parent=1 // pred_check
      _
    $region15: #{tpu_custom_call.1} parent=1 // pred_check_branch
      %28 = sbr.rel (0) target = $region17
    $region16: #{tpu_custom_call.1} parent=1 // pred_region
      %29 = dma.done [#allocation8], 768
    $region17: #{tpu_custom_call.1} parent=1 // pred_fallthru
      _
    %p31 = scmp.eq.s32.totalorder 0, 0
    // Predicated region
    $region18: #{tpu_custom_call.1} parent=1 // pred_check
      %p32 = pneg %p31
    $region19: #{tpu_custom_call.1} parent=1 // pred_check_branch
      %34 = sbr.rel (%p32) target = $region21
    $region20: #{tpu_custom_call.1} parent=1 // pred_region
      %v35 = vld [vmem:[%s0] sm:$0xff]
      %v36 = vmul.f32 %v35, %v35
      %vm37 = vcmask 261120
      %v38 = vsel %vm37, %v36, 0.0
      %39 = vadd.xlane.f32.xlu0 %v38
      %v40 = vpop.xlane.xlu0 %39
      %v41 = vmax.f32 %v40, 1e-24
      %v42 = vrsqrt.pop %v41
      %v43 = vmul.f32 %v42, 15.0
      %v44 = vmul.f32 %v35, %v43
      %v45 = vpack.c.bf16 %v44, %v44
      %vm46 = vcmask 257024
      %47 = vst.msk [vmem:[#allocation2] sm:$0xf] %vm46, %v45
      %vm48 = vcmask 7168
      %49 = vst.msk [vmem:[#allocation3] sm:$0xff] %vm48, -inf
      %50 = vst.msk [vmem:[#allocation4] sm:$0xff] %vm48, 0.0
      %51 = vst.msk [vmem:[#allocation5] sm:$0xff] %vm48, 0.0
      %52 = vst.msk [vmem:[#allocation6] sm:$0xff] %vm48, -inf
    $region21: #{tpu_custom_call.1} parent=1 // pred_fallthru
      _
    %v53 = vld [vmem:[#allocation2] sm:$0xf]
    %v54 = vld [vmem:[%s2] sm:$0xff]
    %v55 = vld [vmem:[#allocation7] sm:$0xf]
    %v56 = vld [vmem:[#allocation7 + $0x4] sm:$0xf]
    %v57 = vld [vmem:[#allocation7 + $0x8] sm:$0xf]
    %v58 = vld [vmem:[#allocation7 + $0xc] sm:$0xf]
    %v63 = vunpack.c.l.b16 %v55
    %v64 = vunpack.c.l.b16 %v56
    %v65 = vunpack.c.l.b16 %v57
    %v66 = vunpack.c.l.b16 %v58
    %v67 = vpack.c.b16 %v64, %v63
    %v68 = vpack.c.b16 %v66, %v65
    %vm71 = vcmask 261120
    %v73 = vsel %vm71, %v53, 0
    %75 = vmatprep.subr.bf16.mxu0 0
    %76 = vmatpush1.bf16.msra.mxu0 %v67
    %77 = vmatprep.subr.bf16.mxu0 0
    %78 = vmatpush1.bf16.msra.mxu0 %v68
    %79 = vmatprep.subr.bf16.mxu0 0
    %80 = vmatpush1.bf16.msra.mxu0 0
    %81 = vmatprep.subr.bf16.mxu0 0
    %82 = vmatpush1.bf16.msra.mxu0 0
    %83 = vmatprep.subr.bf16.mxu0 0
    %84 = vmatpush1.bf16.msra.mxu0 0
    %85 = vmatprep.subr.bf16.mxu0 0
    %86 = vmatpush1.bf16.msra.mxu0 0
    %87 = vmatprep.subr.bf16.mxu0 0
    %88 = vmatpush1.bf16.msra.mxu0 0
    %89 = vmatprep.subr.bf16.mxu0 0
    %90 = vmatpush1.bf16.msra.mxu0 0
    %91 = vmatprep.subr.bf16.mxu0 0
    %92 = vmatpush1.bf16.msra.mxu0 0
    %93 = vmatprep.subr.bf16.mxu0 0
    %94 = vmatpush1.bf16.msra.mxu0 0
    %95 = vmatprep.subr.bf16.mxu0 0
    %96 = vmatpush1.bf16.msra.mxu0 0
    %97 = vmatprep.subr.bf16.mxu0 0
    %98 = vmatpush1.bf16.msra.mxu0 0
    %99 = vmatprep.subr.bf16.mxu0 0
    %100 = vmatpush1.bf16.msra.mxu0 0
    %101 = vmatprep.subr.bf16.mxu0 0
    %102 = vmatpush1.bf16.msra.mxu0 0
    %103 = vmatprep.subr.bf16.mxu0 0
    %104 = vmatpush1.bf16.msra.mxu0 0
    %105 = vmatprep.subr.bf16.mxu0 0
    %106 = vmatpush1.bf16.msra.mxu0 0
    %107 = vmatprep.mubr.bf16.mxu0 0
    %108 = vmatmul.mubr.bf16.gmra.mrb[0].mxu0 %v73
    %v109 = vpop.f32.mrb[0].mxu0
    %v110 = vadd.f32 0.0, %v109
    %v111 = vpop.f32.mrb[0].mxu0
    %v112 = vpop.f32.mrb[0].mxu0
    %v113 = vpop.f32.mrb[0].mxu0
    %114 = vdwg.mxu0
    %s115 = scalar_lea.vmem [#allocation7], 16
    %v116 = vld [vmem:[%s115] sm:$0xf]
    %v117 = vld [vmem:[%s115 + $0x4] sm:$0xf]
    %v118 = vld [vmem:[%s115 + $0x8] sm:$0xf]
    %v119 = vld [vmem:[%s115 + $0xc] sm:$0xf]
    %v124 = vunpack.c.l.b16 %v116
    %v125 = vunpack.c.l.b16 %v117
    %v126 = vunpack.c.l.b16 %v118
    %v127 = vunpack.c.l.b16 %v119
    %v128 = vpack.c.b16 %v125, %v124
    %v129 = vpack.c.b16 %v127, %v126
    %132 = vmatprep.subr.bf16.mxu0 0
    %133 = vmatpush1.bf16.msra.mxu0 %v128
    %134 = vmatprep.subr.bf16.mxu0 0
    %135 = vmatpush1.bf16.msra.mxu0 %v129
    %136 = vmatprep.subr.bf16.mxu0 0
    %137 = vmatpush1.bf16.msra.mxu0 0
    %138 = vmatprep.subr.bf16.mxu0 0
    %139 = vmatpush1.bf16.msra.mxu0 0
    %140 = vmatprep.subr.bf16.mxu0 0
    %141 = vmatpush1.bf16.msra.mxu0 0
    %142 = vmatprep.subr.bf16.mxu0 0
    %143 = vmatpush1.bf16.msra.mxu0 0
    %144 = vmatprep.subr.bf16.mxu0 0
    %145 = vmatpush1.bf16.msra.mxu0 0
    %146 = vmatprep.subr.bf16.mxu0 0
    %147 = vmatpush1.bf16.msra.mxu0 0
    %148 = vmatprep.subr.bf16.mxu0 0
    %149 = vmatpush1.bf16.msra.mxu0 0
    %150 = vmatprep.subr.bf16.mxu0 0
    %151 = vmatpush1.bf16.msra.mxu0 0
    %152 = vmatprep.subr.bf16.mxu0 0
    %153 = vmatpush1.bf16.msra.mxu0 0
    %154 = vmatprep.subr.bf16.mxu0 0
    %155 = vmatpush1.bf16.msra.mxu0 0
    %156 = vmatprep.subr.bf16.mxu0 0
    %157 = vmatpush1.bf16.msra.mxu0 0
    %158 = vmatprep.subr.bf16.mxu0 0
    %159 = vmatpush1.bf16.msra.mxu0 0
    %160 = vmatprep.subr.bf16.mxu0 0
    %161 = vmatpush1.bf16.msra.mxu0 0
    %162 = vmatprep.subr.bf16.mxu0 0
    %163 = vmatpush1.bf16.msra.mxu0 0
    %164 = vmatprep.mubr.bf16.mxu0 0
    %165 = vmatmul.mubr.bf16.gmra.mrb[0].mxu0 %v73
    %v166 = vpop.f32.mrb[0].mxu0
    %v167 = vadd.f32 0.0, %v166
    %v168 = vpop.f32.mrb[0].mxu0
    %v169 = vpop.f32.mrb[0].mxu0
    %v170 = vpop.f32.mrb[0].mxu0
    %171 = vdwg.mxu0
    %v172 = vmax.f32 %v110, %v167
    %s173 = scalar_lea.vmem [#allocation7], 32
    %v174 = vld [vmem:[%s173] sm:$0xf]
    %v175 = vld [vmem:[%s173 + $0x4] sm:$0xf]
    %v176 = vld [vmem:[%s173 + $0x8] sm:$0xf]
    %v177 = vld [vmem:[%s173 + $0xc] sm:$0xf]
    %v182 = vunpack.c.l.b16 %v174
    %v183 = vunpack.c.l.b16 %v175
    %v184 = vunpack.c.l.b16 %v176
    %v185 = vunpack.c.l.b16 %v177
    %v186 = vpack.c.b16 %v183, %v182
    %v187 = vpack.c.b16 %v185, %v184
    %190 = vmatprep.subr.bf16.mxu0 0
    %191 = vmatpush1.bf16.msra.mxu0 %v186
    %192 = vmatprep.subr.bf16.mxu0 0
    %193 = vmatpush1.bf16.msra.mxu0 %v187
    %194 = vmatprep.subr.bf16.mxu0 0
    %195 = vmatpush1.bf16.msra.mxu0 0
    %196 = vmatprep.subr.bf16.mxu0 0
    %197 = vmatpush1.bf16.msra.mxu0 0
    %198 = vmatprep.subr.bf16.mxu0 0
    %199 = vmatpush1.bf16.msra.mxu0 0
    %200 = vmatprep.subr.bf16.mxu0 0
    %201 = vmatpush1.bf16.msra.mxu0 0
    %202 = vmatprep.subr.bf16.mxu0 0
    %203 = vmatpush1.bf16.msra.mxu0 0
    %204 = vmatprep.subr.bf16.mxu0 0
    %205 = vmatpush1.bf16.msra.mxu0 0
    %206 = vmatprep.subr.bf16.mxu0 0
    %207 = vmatpush1.bf16.msra.mxu0 0
    %208 = vmatprep.subr.bf16.mxu0 0
    %209 = vmatpush1.bf16.msra.mxu0 0
    %210 = vmatprep.subr.bf16.mxu0 0
    %211 = vmatpush1.bf16.msra.mxu0 0
    %212 = vmatprep.subr.bf16.mxu0 0
    %213 = vmatpush1.bf16.msra.mxu0 0
    %214 = vmatprep.subr.bf16.mxu0 0
    %215 = vmatpush1.bf16.msra.mxu0 0
    %216 = vmatprep.subr.bf16.mxu0 0
    %217 = vmatpush1.bf16.msra.mxu0 0
    %218 = vmatprep.subr.bf16.mxu0 0
    %219 = vmatpush1.bf16.msra.mxu0 0
    %220 = vmatprep.subr.bf16.mxu0 0
    %221 = vmatpush1.bf16.msra.mxu0 0
    %222 = vmatprep.mubr.bf16.mxu0 0
    %223 = vmatmul.mubr.bf16.gmra.mrb[0].mxu0 %v73
    %v224 = vpop.f32.mrb[0].mxu0
    %v225 = vadd.f32 0.0, %v224
    %v226 = vpop.f32.mrb[0].mxu0
    %v227 = vpop.f32.mrb[0].mxu0
    %v228 = vpop.f32.mrb[0].mxu0
    %229 = vdwg.mxu0
    %v230 = vmax.f32 %v172, %v225
    %v231 = vlaneseq
    %v232 = vand.u32 %v231, 127
    %s233 = smul.u32 0, 128
    %v234 = vstv %s233
    %v235 = vsub.s32 %v54, %v234
    %236 = vset.pattern.permute.xlu0 0
    %237 = vperm.xlu0 %236, %v235
    %v238 = vpop.permute.xlu0 %237
    %vm239 = vcmp.eq.s32.totalorder %v232, %v238
    %s240 = ssub.s32 16, %s233
    %v241 = vstv %s240
    %vm242 = vcmp.lt.s32.totalorder %v232, %v241
    %v243 = vsel %vm242, %v230, -1e+30
    %v244 = vld [vmem:[#allocation3] sm:$0xff]
    %245 = vmax.xlane.f32.xlu0 %v243
    %v246 = vpop.xlane.xlu0 %245
    %v247 = vmax.f32 %v244, %v246
    %249 = vset.pattern.permute.xlu0 0
    %250 = vperm.xlu0 %249, %v247
    %v251 = vpop.permute.xlu0 %250
    %v253 = vsub.f32 %v243, %v251
    %v254 = vmul.f32 %v253, 1.442695
    %v255 = vpow.pop %v254
    %v256 = vld [vmem:[#allocation4] sm:$0xff]
    %v257 = vsub.f32 %v244, %v247
    %v258 = vmul.f32 %v257, 1.442695
    %v259 = vpow.pop %v258
    %v260 = vmul.f32 %v256, %v259
    %261 = vadd.xlane.f32.xlu0 %v255
    %v262 = vpop.xlane.xlu0 %261
    %v263 = vadd.f32 %v260, %v262
    %vm264 = vcmask 7168
    %265 = vst.msk [vmem:[#allocation4] sm:$0xff] %vm264, %v263
    %266 = vst.msk [vmem:[#allocation3] sm:$0xff] %vm264, %v247
    %v267 = vld [vmem:[#allocation5] sm:$0xff]
    %v268 = vsel %vm239, %v243, 0.0
    %269 = vadd.xlane.f32.xlu0 %v268
    %v270 = vpop.xlane.xlu0 %269
    %v271 = vadd.f32 %v267, %v270
    %272 = vst.msk [vmem:[#allocation5] sm:$0xff] %vm264, %v271
    %v273 = vld [vmem:[#allocation6] sm:$0xff]
    %v274 = vsel %vm239, -inf, %v243
    %275 = vmax.xlane.f32.xlu0 %v274
    %v276 = vpop.xlane.xlu0 %275
    %v277 = vmax.f32 %v273, %v276
    %278 = vst.msk [vmem:[#allocation6] sm:$0xff] %vm264, %v277
    // Predicated region
    $region22: #{tpu_custom_call.1} parent=1 // pred_check
      %p279 = pneg %p31
    $region23: #{tpu_custom_call.1} parent=1 // pred_check_branch
      %281 = sbr.rel (%p279) target = $region25
    $region24: #{tpu_custom_call.1} parent=1 // pred_region
      %v282 = vld [vmem:[#allocation5] sm:$0xff]
      %v283 = vmul.f32 %v282, 0.06666667
      %v284 = vmul.f32 %v283, %v283
      %v285 = vsub.f32 1.0, %v284
      %v286 = vmax.f32 %v285, 0.0
      %v287 = vrsqrt.pop %v286
      %v288 = vmul.f32 %v286, %v287
      %vm289 = vcmp.eq.f32.partialorder %v286, inf
      %v290 = vsel %vm289, %v286, %v288
      %vm291 = vcmp.eq.f32.partialorder %v286, 0.0
      %v292 = vand.u32 %v286, 2147483648
      %v293 = vsel %vm291, %v292, %v290
      %v294 = vmul.f32 %v283, 0.9553365
      %v295 = vmul.f32 %v293, 0.29552022
      %v296 = vsub.f32 %v294, %v295
      %v297 = vsub.f32 %v283, -0.9553365
      %vm298 = vcmp.gt.f32.partialorder %v297, 0.0
      %v299 = vsub.f32 %v283, 0.08865606
      %v300 = vsel %vm298, %v296, %v299
      %v301 = vmul.f32 %v300, 15.0
      %v302 = vld [vmem:[#allocation3] sm:$0xff]
      %v303 = vld [vmem:[#allocation4] sm:$0xff]
      %v304 = vsub.f32 %v282, %v302
      %v305 = vmul.f32 %v304, 1.442695
      %v306 = vpow.pop %v305
      %v307 = vsub.f32 %v303, %v306
      %v308 = vsub.f32 %v301, %v302
      %v309 = vmul.f32 %v308, 1.442695
      %v310 = vpow.pop %v309
      %v311 = vadd.f32 %v307, %v310
      %v312 = vmax.f32 %v311, 1e-30
      %v313 = vlog2.pop %v312
      %v314 = vmul.f32 %v313, 0.6931472
      %v315 = vadd.f32 %v302, %v314
      %v316 = vsub.f32 %v315, %v301
      %317 = vst.msk [vmem:[%s3] sm:$0xff] %vm264, %v316
      %v318 = vld [vmem:[#allocation6] sm:$0xff]
      %vm319 = vcmp.ge.f32.partialorder %v301, %v318
      %v320 = vsel %vm319, 1, 0
      %v321 = vcvt.s32.f32 %v320
      %322 = vst.msk [vmem:[%s4] sm:$0xff] %vm264, %v321
    $region25: #{tpu_custom_call.1} parent=1 // pred_fallthru
      _
    // Predicated region
    $region26: #{tpu_custom_call.1} parent=1 // pred_check
      _
    $region27: #{tpu_custom_call.1} parent=1 // pred_check_branch
      %324 = sbr.rel (0) target = $region29
    $region28: #{tpu_custom_call.1} parent=1 // pred_region
      _
    $region29: #{tpu_custom_call.1} parent=1 // pred_fallthru
      _
    // Predicated region
    $region30: #{tpu_custom_call.1} parent=1 // pred_check
      _
    $region31: #{tpu_custom_call.1} parent=1 // pred_check_branch
      %326 = sbr.rel (0) target = $region33
    $region32: #{tpu_custom_call.1} parent=1 // pred_region
      _
    $region33: #{tpu_custom_call.1} parent=1 // pred_fallthru
      _
    // Predicated region
    $region34: #{tpu_custom_call.1} parent=1 // pred_check
      _
    $region35: #{tpu_custom_call.1} parent=1 // pred_check_branch
      %328 = sbr.rel (0) target = $region37
    $region36: #{tpu_custom_call.1} parent=1 // pred_region
      _
    $region37: #{tpu_custom_call.1} parent=1 // pred_fallthru
      _
    // Predicated region
    $region38: #{tpu_custom_call.1} parent=1 // pred_check
      _
    $region39: #{tpu_custom_call.1} parent=1 // pred_check_branch
      %330 = sbr.rel (0) target = $region41
    $region40: #{tpu_custom_call.1} parent=1 // pred_region
      _
    $region41: #{tpu_custom_call.1} parent=1 // pred_fallthru
      _
    %331 = vsyncpa [#allocation8], 1

</llo_original>
